<compile_context>
chip_gen: v7x
topology: tpu7x:2x2x1
jax: 0.10.0
libtpu: 0.0.40
codegen_flags: <defaults>
</compile_context>

<pallas_src>
import numpy as np
import jax
import jax.numpy as jnp
from jax import lax
from jax.experimental import pallas as pl
from jax.experimental.pallas import tpu as pltpu


def _vmem_limits():
    """Returns (vmem_limit_bytes, halo_scratch_budget_bytes) for this chip."""
    cap = 64 << 20
    try:
        info = pltpu.get_tpu_info()
        cap = int(getattr(info, "vmem_capacity_bytes", cap))
    except Exception:
        pass
    cap = max(cap, 32 << 20)
    vmem_limit = min((cap // 4) * 3, 96 << 20)       # 48 MiB on v7x, 96 MiB on v5e/v6e
    scratch_budget = max(vmem_limit - (12 << 20), 8 << 20)
    return vmem_limit, scratch_budget


def _auto_tile_h(h_base, w, span, scratch_budget_bytes):
    # Dominant VMEM consumer post-fusion: the 4 double-buffered f32 halo
    # buffers = 2 tensors * 2 slots * (tile_h + 2*span) * W * 4 bytes.
    th = scratch_budget_bytes // (16 * w) - 2 * span
    th = max(1, min(int(th), h_base))
    if th > 8:
        th -= th % 8                                  # sublane-aligned tiles
    return th


def _make_rd_loss_kernel(H, W, span, span_list, tile_h, chunk_h):
    s = int(span)
    h_base = H - 2 * s
    halo_rows = tile_h + 2 * s
    n_chunks = tile_h // chunk_h
    assert n_chunks * chunk_h == tile_h

    # (row_offset, col_offset) of each neighbour block relative to the base
    # block -- matches the torch module's 8 directional slices.
    offs = [
        (-span_list[0], 0),               # top
        (+span_list[1], 0),               # bottom
        (0, -span_list[2]),               # left
        (0, +span_list[3]),               # right
        (-span_list[4], -span_list[4]),   # top-left
        (-span_list[5], +span_list[5]),   # top-right
        (+span_list[6], -span_list[6]),   # bottom-left
        (+span_list[7], +span_list[7]),   # bottom-right
    ]

    tiny = np.float32(np.finfo(np.float32).tiny)

    def kernel(pred_hbm, gt_hbm, out_ref, pbuf, gbuf, sem, acc_sm):
        b = pl.program_id(0)
        i = pl.program_id(1)
        n_tiles = pl.num_programs(1)
        slot = i % 2

        def row_start(idx):
            # Clamp the last (possibly partial) tile so the halo never reads
            # past row H; double-counted rows are masked out below.
            return jnp.minimum(idx * tile_h, h_base - tile_h)

        def halo_copies(batch, row0, slot_idx):
            return (
                pltpu.make_async_copy(
                    pred_hbm.at[batch, pl.ds(row0, halo_rows), :],
                    pbuf.at[slot_idx], sem.at[0, slot_idx]),
                pltpu.make_async_copy(
                    gt_hbm.at[batch, pl.ds(row0, halo_rows), :],
                    gbuf.at[slot_idx], sem.at[1, slot_idx]),
            )

        row0 = row_start(i)

        @pl.when(i == 0)
        def _():                              # per-batch: reset + prime pipeline
            acc_sm[0] = jnp.float32(0.0)
            for cp in halo_copies(b, row0, slot):
                cp.start()

        for cp in halo_copies(b, row0, slot):  # wait for the current halo block
            cp.wait()

        @pl.when(i + 1 < n_tiles)
        def _():                              # prefetch the next row-tile
            for cp in halo_copies(b, row_start(i + 1), 1 - slot):
                cp.start()

        row_lo = i * tile_h - row0            # > 0 only for the clamped last tile

        # Hoisted constants (computed once per tile, reused by every chunk).
        row_iota = lax.broadcasted_iota(jnp.int32, (chunk_h, 1), 0)
        col_ids = lax.broadcasted_iota(jnp.int32, (chunk_h, W), 1)
        col_valid = (col_ids >= s) & (col_ids < W - s)

        def chunk_body(ci, acc):
            c0 = ci * chunk_h
            p_base = pbuf[slot, pl.ds(s + c0, chunk_h), :]
            g_base = gbuf[slot, pl.ds(s + c0, chunk_h), :]
            p_n2 = jnp.zeros((chunk_h, W), jnp.float32)
            g_n2 = jnp.zeros((chunk_h, W), jnp.float32)
            pds, gds = [], []
            for dr, dc in offs:
                ps = pbuf[slot, pl.ds(s + dr + c0, chunk_h), :]
                gs = gbuf[slot, pl.ds(s + dr + c0, chunk_h), :]
                if dc != 0:
                    # out[c] = in[(c + dc) mod W]; wrapped lanes fall outside
                    # the valid-column mask because |dc| <= span.
                    shift = (-dc) % W
                    ps = pltpu.roll(ps, shift, axis=1)
                    gs = pltpu.roll(gs, shift, axis=1)
                pd = p_base - ps
                gd = g_base - gs
                p_n2 = p_n2 + pd * pd
                g_n2 = g_n2 + gd * gd
                pds.append(pd)
                gds.append(gd)
            # masked_fill(norm == 0, 1.0) equivalent: diffs are exactly 0 there.
            inv_p = lax.rsqrt(jnp.maximum(p_n2, tiny))
            inv_g = lax.rsqrt(jnp.maximum(g_n2, tiny))
            csum = jnp.zeros((chunk_h, W), jnp.float32)
            for pd, gd in zip(pds, gds):
                csum = csum + jnp.abs(pd * inv_p - gd * inv_g)
            row_ok = (row_iota + c0) >= row_lo        # (chunk_h, 1) broadcast
            return acc + jnp.where(row_ok, csum, jnp.float32(0.0))

        acc = lax.fori_loop(0, n_chunks, chunk_body,
                            jnp.zeros((chunk_h, W), jnp.float32))

        # Column mask once per tile, single cross-lane reduction per tile.
        partial = jnp.sum(jnp.where(col_valid, acc, jnp.float32(0.0)))
        acc_sm[0] = acc_sm[0] + partial

        @pl.when(i == n_tiles - 1)
        def _():                              # one HBM block write per batch
            out_ref[...] = jnp.full((1, 8, 128), acc_sm[0], dtype=jnp.float32)

    return kernel


def rd_loss7(pred, gt, span=30, seed=0, tile_h=None):
    """pred, gt: (B, 1, H, W) float32 depth maps (NCHW, like the torch module)."""
    B, C, H, W = pred.shape
    assert C == 1, "RD_loss7 expects single-channel depth maps (B, 1, H, W)"
    s = int(span)
    assert H > 2 * s and W > 2 * s, "depth map too small for the given span"

    # TODO(synk): the torch module draws span_list with np.random on every
    # forward; here a seeded host RNG stands in (host RNG stays outside the kernel).
    rng = np.random.RandomState(seed)
    span_list = [int(v) for v in rng.randint(1, s + 1, size=8)]
    assert max(span_list) <= s  # keeps column-roll wrap-around inside the masked edge

    p = pred[:, 0, :, :].astype(jnp.float32)
    g = gt[:, 0, :, :].astype(jnp.float32)

    h_base, w_base = H - 2 * s, W - 2 * s
    vmem_limit, scratch_budget = _vmem_limits()
    if tile_h is None:
        tile_h = _auto_tile_h(h_base, W, s, scratch_budget)
    tile_h = int(max(1, min(int(tile_h), h_base)))
    if tile_h > 8:
        tile_h -= tile_h % 8
    chunk_h = 8 if tile_h % 8 == 0 else tile_h
    n_tiles = pl.cdiv(h_base, tile_h)
    halo_rows = tile_h + 2 * s

    kernel = _make_rd_loss_kernel(H, W, s, span_list, tile_h, chunk_h)

    partials = pl.pallas_call(
        kernel,
        out_shape=jax.ShapeDtypeStruct((B, 8, 128), jnp.float32),
        grid_spec=pltpu.PrefetchScalarGridSpec(
            num_scalar_prefetch=0,
            grid=(B, n_tiles),
            in_specs=[pl.BlockSpec(memory_space=pl.ANY),   # pred stays in HBM
                      pl.BlockSpec(memory_space=pl.ANY)],  # gt stays in HBM
            # Same block for every tile of a batch -> resident accumulator,
            # written once per batch at the last tile.
            out_specs=pl.BlockSpec((1, 8, 128), lambda b, i: (b, 0, 0)),
            scratch_shapes=[
                pltpu.VMEM((2, halo_rows, W), jnp.float32),  # pred halo buffers
                pltpu.VMEM((2, halo_rows, W), jnp.float32),  # gt halo buffers
                pltpu.SemaphoreType.DMA((2, 2)),             # [tensor, slot]
                pltpu.SMEM((1,), jnp.float32),               # per-batch scalar acc
            ]),
        compiler_params=pltpu.CompilerParams(
            dimension_semantics=("parallel", "arbitrary"),
            vmem_limit_bytes=vmem_limit),
    )(p, g)

    loss = jnp.sum(partials[:, 0, 0]) / jnp.float32(B * h_base * w_base * 8)
    return loss, span_list


def _reference(pred, gt, span, span_list):
    """Pure-JAX reference mirroring the torch module."""
    B, C, H, W = pred.shape
    s = span
    h, w = H - 2 * s, W - 2 * s
    offs = [
        (-span_list[0], 0), (+span_list[1], 0),
        (0, -span_list[2]), (0, +span_list[3]),
        (-span_list[4], -span_list[4]), (-span_list[5], +span_list[5]),
        (+span_list[6], -span_list[6]), (+span_list[7], +span_list[7]),
    ]

    def compute_rd(x):
        base = x[:, :, s:s + h, s:s + w]
        rds = [base - x[:, :, s + dr:s + dr + h, s + dc:s + dc + w]
               for (dr, dc) in offs]
        rd = jnp.concatenate(rds, axis=1)          # (B, 8, h, w)
        return jnp.transpose(rd, (0, 2, 3, 1))     # (B, h, w, 8)

    pr = compute_rd(pred)
    gr = compute_rd(gt)
    pn = jnp.linalg.norm(pr, axis=3, keepdims=True)
    gn = jnp.linalg.norm(gr, axis=3, keepdims=True)
    pn = jnp.where(pn == 0.0, 1.0, pn)
    gn = jnp.where(gn == 0.0, 1.0, gn)
    return jnp.mean(jnp.abs(pr / pn - gr / gn))


if __name__ == "__main__":
    B, C, H, W = 2, 1, 64, 128
    span = 4

    key = jax.random.PRNGKey(0)
    k1, k2 = jax.random.split(key)
    pred = jax.random.uniform(k1, (B, C, H, W), dtype=jnp.float32)
    gt = jax.random.uniform(k2, (B, C, H, W), dtype=jnp.float32)

    # tile_h=16 -> 4 row-tiles per batch (last one clamped + row-masked) and 2
    # chunks per tile, so the halo double-buffering, pltpu.roll column shifts,
    # chunked fused accumulation and both masks are all exercised.
    loss, span_list = rd_loss7(pred, gt, span=span, seed=0, tile_h=16)
    loss = jax.block_until_ready(loss)

    ref = jax.block_until_ready(_reference(pred, gt, span, span_list))
    np.testing.assert_allclose(np.asarray(loss), np.asarray(ref),
                               rtol=2e-5, atol=2e-6)
    print("KERNEL_OK")
</pallas_src>

<mosaic_0001>
module attributes {stable_mosaic.version = 11 : i64} {
  func.func @kernel(%arg0: i32, %arg1: i32, %arg2: memref<2x64x128xf32, #tpu.memory_space<any>>, %arg3: memref<2x64x128xf32, #tpu.memory_space<any>>, %arg4: memref<1x8x128xf32, #tpu.memory_space<vmem>>, %arg5: memref<2x24x128xf32, #tpu.memory_space<vmem>>, %arg6: memref<2x24x128xf32, #tpu.memory_space<vmem>>, %arg7: memref<2x2x!tpu.dma_semaphore, #tpu.memory_space<semaphore_mem>>, %arg8: memref<1xf32, #tpu.memory_space<smem>>) attributes {dimension_semantics = [#tpu.dimension_semantics<parallel>, #tpu.dimension_semantics<arbitrary>], iteration_bounds = array<i64: 2, 4>, scalar_prefetch = 0 : i64, scratch_operands = 4 : i64, tpu.core_type = #tpu.core_type<tc>, window_params = [{}, {}, {transform_indices = @transform_2, window_bounds = array<i64: 1, 8, 128>}]} {
    %c2_i32 = arith.constant 2 : i32
    %c0_i32 = arith.constant 0 : i32
    %0 = arith.cmpi eq, %c2_i32, %c0_i32 : i32
    %c1_i32 = arith.constant 1 : i32
    %1 = arith.select %0, %c1_i32, %c2_i32 : i32
    %2 = arith.remsi %arg1, %1 : i32
    %c0_i32_0 = arith.constant 0 : i32
    %3 = arith.cmpi ne, %2, %c0_i32_0 : i32
    %c0_i32_1 = arith.constant 0 : i32
    %4 = arith.cmpi slt, %2, %c0_i32_1 : i32
    %c0_i32_2 = arith.constant 0 : i32
    %5 = arith.cmpi slt, %1, %c0_i32_2 : i32
    %6 = arith.xori %4, %5 : i1
    %7 = arith.andi %6, %3 : i1
    %8 = arith.addi %2, %1 : i32
    %9 = arith.select %7, %8, %2 : i32
    %c16_i32 = arith.constant 16 : i32
    %10 = arith.muli %arg1, %c16_i32 : i32
    %c40_i32 = arith.constant 40 : i32
    %11 = arith.minsi %10, %c40_i32 : i32
    %c0_i32_3 = arith.constant 0 : i32
    %12 = arith.cmpi eq, %arg1, %c0_i32_3 : i32
    %13 = arith.extui %12 : i1 to i32
    %c0_i32_4 = arith.constant 0 : i32
    %14 = arith.cmpi ne, %13, %c0_i32_4 : i32
    scf.if %14 {
      %cst_25 = arith.constant 0.000000e+00 : f32
      %c0_26 = arith.constant 0 : index
      %55 = memref.load %arg8[%c0_26] : memref<1xf32, #tpu.memory_space<smem>>
      memref.store %cst_25, %arg8[%c0_26] : memref<1xf32, #tpu.memory_space<smem>>
      %c0_i32_27 = arith.constant 0 : i32
      %c0_i32_28 = arith.constant 0 : i32
      %56 = tpu.memref_slice %arg2[%arg0, %11, %c0_i32_28] : memref<2x64x128xf32, #tpu.memory_space<any>> -> memref<1x24x128xf32, #tpu.memory_space<any>>
      %57 = tpu.memref_squeeze %56 : memref<1x24x128xf32, #tpu.memory_space<any>> -> memref<24x128xf32, #tpu.memory_space<any>>
      %c0_i32_29 = arith.constant 0 : i32
      %c0_i32_30 = arith.constant 0 : i32
      %58 = tpu.memref_slice %arg5[%9, %c0_i32_29, %c0_i32_30] : memref<2x24x128xf32, #tpu.memory_space<vmem>> -> memref<1x24x128xf32, #tpu.memory_space<vmem>>
      %59 = tpu.memref_squeeze %58 : memref<1x24x128xf32, #tpu.memory_space<vmem>> -> memref<24x128xf32, #tpu.memory_space<vmem>>
      %60 = tpu.memref_slice %arg7[%c0_i32_27, %9] : memref<2x2x!tpu.dma_semaphore, #tpu.memory_space<semaphore_mem>> -> memref<1x1x!tpu.dma_semaphore, #tpu.memory_space<semaphore_mem>>
      %61 = tpu.memref_squeeze %60 : memref<1x1x!tpu.dma_semaphore, #tpu.memory_space<semaphore_mem>> -> memref<!tpu.dma_semaphore, #tpu.memory_space<semaphore_mem>>
      tpu.enqueue_dma source(%57 : memref<24x128xf32, #tpu.memory_space<any>>) target(%59 : memref<24x128xf32, #tpu.memory_space<vmem>>) target_semaphore(%61 : memref<!tpu.dma_semaphore, #tpu.memory_space<semaphore_mem>>)
      %c1_i32_31 = arith.constant 1 : i32
      %c0_i32_32 = arith.constant 0 : i32
      %62 = tpu.memref_slice %arg3[%arg0, %11, %c0_i32_32] : memref<2x64x128xf32, #tpu.memory_space<any>> -> memref<1x24x128xf32, #tpu.memory_space<any>>
      %63 = tpu.memref_squeeze %62 : memref<1x24x128xf32, #tpu.memory_space<any>> -> memref<24x128xf32, #tpu.memory_space<any>>
      %c0_i32_33 = arith.constant 0 : i32
      %c0_i32_34 = arith.constant 0 : i32
      %64 = tpu.memref_slice %arg6[%9, %c0_i32_33, %c0_i32_34] : memref<2x24x128xf32, #tpu.memory_space<vmem>> -> memref<1x24x128xf32, #tpu.memory_space<vmem>>
      %65 = tpu.memref_squeeze %64 : memref<1x24x128xf32, #tpu.memory_space<vmem>> -> memref<24x128xf32, #tpu.memory_space<vmem>>
      %66 = tpu.memref_slice %arg7[%c1_i32_31, %9] : memref<2x2x!tpu.dma_semaphore, #tpu.memory_space<semaphore_mem>> -> memref<1x1x!tpu.dma_semaphore, #tpu.memory_space<semaphore_mem>>
      %67 = tpu.memref_squeeze %66 : memref<1x1x!tpu.dma_semaphore, #tpu.memory_space<semaphore_mem>> -> memref<!tpu.dma_semaphore, #tpu.memory_space<semaphore_mem>>
      tpu.enqueue_dma source(%63 : memref<24x128xf32, #tpu.memory_space<any>>) target(%65 : memref<24x128xf32, #tpu.memory_space<vmem>>) target_semaphore(%67 : memref<!tpu.dma_semaphore, #tpu.memory_space<semaphore_mem>>)
    } else {
    }
    %c0_i32_5 = arith.constant 0 : i32
    %c0_i32_6 = arith.constant 0 : i32
    %15 = tpu.memref_slice %arg2[%arg0, %11, %c0_i32_6] : memref<2x64x128xf32, #tpu.memory_space<any>> -> memref<1x24x128xf32, #tpu.memory_space<any>>
    %16 = tpu.memref_squeeze %15 : memref<1x24x128xf32, #tpu.memory_space<any>> -> memref<24x128xf32, #tpu.memory_space<any>>
    %c0_i32_7 = arith.constant 0 : i32
    %c0_i32_8 = arith.constant 0 : i32
    %17 = tpu.memref_slice %arg5[%9, %c0_i32_7, %c0_i32_8] : memref<2x24x128xf32, #tpu.memory_space<vmem>> -> memref<1x24x128xf32, #tpu.memory_space<vmem>>
    %18 = tpu.memref_squeeze %17 : memref<1x24x128xf32, #tpu.memory_space<vmem>> -> memref<24x128xf32, #tpu.memory_space<vmem>>
    %19 = tpu.memref_slice %arg7[%c0_i32_5, %9] : memref<2x2x!tpu.dma_semaphore, #tpu.memory_space<semaphore_mem>> -> memref<1x1x!tpu.dma_semaphore, #tpu.memory_space<semaphore_mem>>
    %20 = tpu.memref_squeeze %19 : memref<1x1x!tpu.dma_semaphore, #tpu.memory_space<semaphore_mem>> -> memref<!tpu.dma_semaphore, #tpu.memory_space<semaphore_mem>>
    tpu.wait_dma2 semaphore(%20 : memref<!tpu.dma_semaphore, #tpu.memory_space<semaphore_mem>>) src(%16 : memref<24x128xf32, #tpu.memory_space<any>>) dst(%18 : memref<24x128xf32, #tpu.memory_space<vmem>>)
    %c1_i32_9 = arith.constant 1 : i32
    %c0_i32_10 = arith.constant 0 : i32
    %21 = tpu.memref_slice %arg3[%arg0, %11, %c0_i32_10] : memref<2x64x128xf32, #tpu.memory_space<any>> -> memref<1x24x128xf32, #tpu.memory_space<any>>
    %22 = tpu.memref_squeeze %21 : memref<1x24x128xf32, #tpu.memory_space<any>> -> memref<24x128xf32, #tpu.memory_space<any>>
    %c0_i32_11 = arith.constant 0 : i32
    %c0_i32_12 = arith.constant 0 : i32
    %23 = tpu.memref_slice %arg6[%9, %c0_i32_11, %c0_i32_12] : memref<2x24x128xf32, #tpu.memory_space<vmem>> -> memref<1x24x128xf32, #tpu.memory_space<vmem>>
    %24 = tpu.memref_squeeze %23 : memref<1x24x128xf32, #tpu.memory_space<vmem>> -> memref<24x128xf32, #tpu.memory_space<vmem>>
    %25 = tpu.memref_slice %arg7[%c1_i32_9, %9] : memref<2x2x!tpu.dma_semaphore, #tpu.memory_space<semaphore_mem>> -> memref<1x1x!tpu.dma_semaphore, #tpu.memory_space<semaphore_mem>>
    %26 = tpu.memref_squeeze %25 : memref<1x1x!tpu.dma_semaphore, #tpu.memory_space<semaphore_mem>> -> memref<!tpu.dma_semaphore, #tpu.memory_space<semaphore_mem>>
    tpu.wait_dma2 semaphore(%26 : memref<!tpu.dma_semaphore, #tpu.memory_space<semaphore_mem>>) src(%22 : memref<24x128xf32, #tpu.memory_space<any>>) dst(%24 : memref<24x128xf32, #tpu.memory_space<vmem>>)
    %c1_i32_13 = arith.constant 1 : i32
    %27 = arith.addi %arg1, %c1_i32_13 : i32
    %c4_i32 = arith.constant 4 : i32
    %28 = arith.cmpi slt, %27, %c4_i32 : i32
    %29 = arith.extui %28 : i1 to i32
    %c0_i32_14 = arith.constant 0 : i32
    %30 = arith.cmpi ne, %29, %c0_i32_14 : i32
    scf.if %30 {
      %c1_i32_25 = arith.constant 1 : i32
      %55 = arith.addi %arg1, %c1_i32_25 : i32
      %c16_i32_26 = arith.constant 16 : i32
      %56 = arith.muli %55, %c16_i32_26 : i32
      %c40_i32_27 = arith.constant 40 : i32
      %57 = arith.minsi %56, %c40_i32_27 : i32
      %c1_i32_28 = arith.constant 1 : i32
      %58 = arith.subi %c1_i32_28, %9 : i32
      %c0_i32_29 = arith.constant 0 : i32
      %c0_i32_30 = arith.constant 0 : i32
      %59 = tpu.memref_slice %arg2[%arg0, %57, %c0_i32_30] : memref<2x64x128xf32, #tpu.memory_space<any>> -> memref<1x24x128xf32, #tpu.memory_space<any>>
      %60 = tpu.memref_squeeze %59 : memref<1x24x128xf32, #tpu.memory_space<any>> -> memref<24x128xf32, #tpu.memory_space<any>>
      %c0_i32_31 = arith.constant 0 : i32
      %c0_i32_32 = arith.constant 0 : i32
      %61 = tpu.memref_slice %arg5[%58, %c0_i32_31, %c0_i32_32] : memref<2x24x128xf32, #tpu.memory_space<vmem>> -> memref<1x24x128xf32, #tpu.memory_space<vmem>>
      %62 = tpu.memref_squeeze %61 : memref<1x24x128xf32, #tpu.memory_space<vmem>> -> memref<24x128xf32, #tpu.memory_space<vmem>>
      %63 = tpu.memref_slice %arg7[%c0_i32_29, %58] : memref<2x2x!tpu.dma_semaphore, #tpu.memory_space<semaphore_mem>> -> memref<1x1x!tpu.dma_semaphore, #tpu.memory_space<semaphore_mem>>
      %64 = tpu.memref_squeeze %63 : memref<1x1x!tpu.dma_semaphore, #tpu.memory_space<semaphore_mem>> -> memref<!tpu.dma_semaphore, #tpu.memory_space<semaphore_mem>>
      tpu.enqueue_dma source(%60 : memref<24x128xf32, #tpu.memory_space<any>>) target(%62 : memref<24x128xf32, #tpu.memory_space<vmem>>) target_semaphore(%64 : memref<!tpu.dma_semaphore, #tpu.memory_space<semaphore_mem>>)
      %c1_i32_33 = arith.constant 1 : i32
      %c0_i32_34 = arith.constant 0 : i32
      %65 = tpu.memref_slice %arg3[%arg0, %57, %c0_i32_34] : memref<2x64x128xf32, #tpu.memory_space<any>> -> memref<1x24x128xf32, #tpu.memory_space<any>>
      %66 = tpu.memref_squeeze %65 : memref<1x24x128xf32, #tpu.memory_space<any>> -> memref<24x128xf32, #tpu.memory_space<any>>
      %c0_i32_35 = arith.constant 0 : i32
      %c0_i32_36 = arith.constant 0 : i32
      %67 = tpu.memref_slice %arg6[%58, %c0_i32_35, %c0_i32_36] : memref<2x24x128xf32, #tpu.memory_space<vmem>> -> memref<1x24x128xf32, #tpu.memory_space<vmem>>
      %68 = tpu.memref_squeeze %67 : memref<1x24x128xf32, #tpu.memory_space<vmem>> -> memref<24x128xf32, #tpu.memory_space<vmem>>
      %69 = tpu.memref_slice %arg7[%c1_i32_33, %58] : memref<2x2x!tpu.dma_semaphore, #tpu.memory_space<semaphore_mem>> -> memref<1x1x!tpu.dma_semaphore, #tpu.memory_space<semaphore_mem>>
      %70 = tpu.memref_squeeze %69 : memref<1x1x!tpu.dma_semaphore, #tpu.memory_space<semaphore_mem>> -> memref<!tpu.dma_semaphore, #tpu.memory_space<semaphore_mem>>
      tpu.enqueue_dma source(%66 : memref<24x128xf32, #tpu.memory_space<any>>) target(%68 : memref<24x128xf32, #tpu.memory_space<vmem>>) target_semaphore(%70 : memref<!tpu.dma_semaphore, #tpu.memory_space<semaphore_mem>>)
    } else {
    }
    %c16_i32_15 = arith.constant 16 : i32
    %31 = arith.muli %arg1, %c16_i32_15 : i32
    %32 = arith.subi %31, %11 : i32
    %33 = tpu.iota {dimensions = array<i32: 0>} : vector<8x1xi32>
    %34 = tpu.iota {dimensions = array<i32: 1>} : vector<8x128xi32>
    %c4_i32_16 = arith.constant 4 : i32
    %35 = vector.broadcast %c4_i32_16 : i32 to vector<8x128xi32>
    %36 = arith.cmpi sge, %34, %35 : vector<8x128xi32>
    %c124_i32 = arith.constant 124 : i32
    %37 = vector.broadcast %c124_i32 : i32 to vector<8x128xi32>
    %38 = arith.cmpi slt, %34, %37 : vector<8x128xi32>
    %39 = arith.andi %36, %38 : vector<8x128xi1>
    %cst = arith.constant 0.000000e+00 : f32
    %40 = vector.broadcast %cst : f32 to vector<8x128xf32>
    %c0_i32_17 = arith.constant 0 : i32
    %c2_i32_18 = arith.constant 2 : i32
    %41 = arith.addi %c0_i32_17, %c2_i32_18 : i32
    %c1_i32_19 = arith.constant 1 : i32
    %42 = scf.for %arg9 = %c0_i32_17 to %41 step %c1_i32_19 iter_args(%arg10 = %40) -> (vector<8x128xf32>)  : i32 {
      %c8_i32 = arith.constant 8 : i32
      %55 = arith.muli %arg9, %c8_i32 : i32
      %c4_i32_25 = arith.constant 4 : i32
      %56 = arith.addi %c4_i32_25, %55 : i32
      %57 = arith.index_cast %9 : i32 to index
      %58 = arith.index_cast %56 : i32 to index
      %c0_26 = arith.constant 0 : index
      %59 = vector.load %arg5[%57, %58, %c0_26] : memref<2x24x128xf32, #tpu.memory_space<vmem>>, vector<1x8x128xf32>
      %60 = vector.shape_cast %59 : vector<1x8x128xf32> to vector<8x128xf32>
      %c4_i32_27 = arith.constant 4 : i32
      %61 = arith.addi %c4_i32_27, %55 : i32
      %62 = arith.index_cast %9 : i32 to index
      %63 = arith.index_cast %61 : i32 to index
      %c0_28 = arith.constant 0 : index
      %64 = vector.load %arg6[%62, %63, %c0_28] : memref<2x24x128xf32, #tpu.memory_space<vmem>>, vector<1x8x128xf32>
      %65 = vector.shape_cast %64 : vector<1x8x128xf32> to vector<8x128xf32>
      %cst_29 = arith.constant 0.000000e+00 : f32
      %66 = vector.broadcast %cst_29 : f32 to vector<8x128xf32>
      %cst_30 = arith.constant 0.000000e+00 : f32
      %67 = vector.broadcast %cst_30 : f32 to vector<8x128xf32>
      %c3_i32_31 = arith.constant 3 : i32
      %68 = arith.addi %c3_i32_31, %55 : i32
      %69 = arith.index_cast %9 : i32 to index
      %70 = arith.index_cast %68 : i32 to index
      %c0_32 = arith.constant 0 : index
      %71 = vector.load %arg5[%69, %70, %c0_32] : memref<2x24x128xf32, #tpu.memory_space<vmem>>, vector<1x8x128xf32>
      %72 = vector.shape_cast %71 : vector<1x8x128xf32> to vector<8x128xf32>
      %c3_i32_33 = arith.constant 3 : i32
      %73 = arith.addi %c3_i32_33, %55 : i32
      %74 = arith.index_cast %9 : i32 to index
      %75 = arith.index_cast %73 : i32 to index
      %c0_34 = arith.constant 0 : index
      %76 = vector.load %arg6[%74, %75, %c0_34] : memref<2x24x128xf32, #tpu.memory_space<vmem>>, vector<1x8x128xf32>
      %77 = vector.shape_cast %76 : vector<1x8x128xf32> to vector<8x128xf32>
      %78 = arith.subf %60, %72 : vector<8x128xf32>
      %79 = arith.subf %65, %77 : vector<8x128xf32>
      %80 = arith.mulf %78, %78 : vector<8x128xf32>
      %81 = arith.addf %66, %80 : vector<8x128xf32>
      %82 = arith.mulf %79, %79 : vector<8x128xf32>
      %83 = arith.addf %67, %82 : vector<8x128xf32>
      %c8_i32_35 = arith.constant 8 : i32
      %84 = arith.addi %c8_i32_35, %55 : i32
      %85 = arith.index_cast %9 : i32 to index
      %86 = arith.index_cast %84 : i32 to index
      %c0_36 = arith.constant 0 : index
      %87 = vector.load %arg5[%85, %86, %c0_36] : memref<2x24x128xf32, #tpu.memory_space<vmem>>, vector<1x8x128xf32>
      %88 = vector.shape_cast %87 : vector<1x8x128xf32> to vector<8x128xf32>
      %c8_i32_37 = arith.constant 8 : i32
      %89 = arith.addi %c8_i32_37, %55 : i32
      %90 = arith.index_cast %9 : i32 to index
      %91 = arith.index_cast %89 : i32 to index
      %c0_38 = arith.constant 0 : index
      %92 = vector.load %arg6[%90, %91, %c0_38] : memref<2x24x128xf32, #tpu.memory_space<vmem>>, vector<1x8x128xf32>
      %93 = vector.shape_cast %92 : vector<1x8x128xf32> to vector<8x128xf32>
      %94 = arith.subf %60, %88 : vector<8x128xf32>
      %95 = arith.subf %65, %93 : vector<8x128xf32>
      %96 = arith.mulf %94, %94 : vector<8x128xf32>
      %97 = arith.addf %81, %96 : vector<8x128xf32>
      %98 = arith.mulf %95, %95 : vector<8x128xf32>
      %99 = arith.addf %83, %98 : vector<8x128xf32>
      %c4_i32_39 = arith.constant 4 : i32
      %100 = arith.addi %c4_i32_39, %55 : i32
      %101 = arith.index_cast %9 : i32 to index
      %102 = arith.index_cast %100 : i32 to index
      %c0_40 = arith.constant 0 : index
      %103 = vector.load %arg5[%101, %102, %c0_40] : memref<2x24x128xf32, #tpu.memory_space<vmem>>, vector<1x8x128xf32>
      %104 = vector.shape_cast %103 : vector<1x8x128xf32> to vector<8x128xf32>
      %c4_i32_41 = arith.constant 4 : i32
      %105 = arith.addi %c4_i32_41, %55 : i32
      %106 = arith.index_cast %9 : i32 to index
      %107 = arith.index_cast %105 : i32 to index
      %c0_42 = arith.constant 0 : index
      %108 = vector.load %arg6[%106, %107, %c0_42] : memref<2x24x128xf32, #tpu.memory_space<vmem>>, vector<1x8x128xf32>
      %109 = vector.shape_cast %108 : vector<1x8x128xf32> to vector<8x128xf32>
      %c2_i32_43 = arith.constant 2 : i32
      %110 = tpu.dynamic_rotate %104 by %c2_i32_43 dim 1 : vector<8x128xf32>, i32 -> vector<8x128xf32>
      %c2_i32_44 = arith.constant 2 : i32
      %111 = tpu.dynamic_rotate %109 by %c2_i32_44 dim 1 : vector<8x128xf32>, i32 -> vector<8x128xf32>
      %112 = arith.subf %60, %110 : vector<8x128xf32>
      %113 = arith.subf %65, %111 : vector<8x128xf32>
      %114 = arith.mulf %112, %112 : vector<8x128xf32>
      %115 = arith.addf %97, %114 : vector<8x128xf32>
      %116 = arith.mulf %113, %113 : vector<8x128xf32>
      %117 = arith.addf %99, %116 : vector<8x128xf32>
      %c4_i32_45 = arith.constant 4 : i32
      %118 = arith.addi %c4_i32_45, %55 : i32
      %119 = arith.index_cast %9 : i32 to index
      %120 = arith.index_cast %118 : i32 to index
      %c0_46 = arith.constant 0 : index
      %121 = vector.load %arg5[%119, %120, %c0_46] : memref<2x24x128xf32, #tpu.memory_space<vmem>>, vector<1x8x128xf32>
      %122 = vector.shape_cast %121 : vector<1x8x128xf32> to vector<8x128xf32>
      %c4_i32_47 = arith.constant 4 : i32
      %123 = arith.addi %c4_i32_47, %55 : i32
      %124 = arith.index_cast %9 : i32 to index
      %125 = arith.index_cast %123 : i32 to index
      %c0_48 = arith.constant 0 : index
      %126 = vector.load %arg6[%124, %125, %c0_48] : memref<2x24x128xf32, #tpu.memory_space<vmem>>, vector<1x8x128xf32>
      %127 = vector.shape_cast %126 : vector<1x8x128xf32> to vector<8x128xf32>
      %c127_i32 = arith.constant 127 : i32
      %128 = tpu.dynamic_rotate %122 by %c127_i32 dim 1 : vector<8x128xf32>, i32 -> vector<8x128xf32>
      %c127_i32_49 = arith.constant 127 : i32
      %129 = tpu.dynamic_rotate %127 by %c127_i32_49 dim 1 : vector<8x128xf32>, i32 -> vector<8x128xf32>
      %130 = arith.subf %60, %128 : vector<8x128xf32>
      %131 = arith.subf %65, %129 : vector<8x128xf32>
      %132 = arith.mulf %130, %130 : vector<8x128xf32>
      %133 = arith.addf %115, %132 : vector<8x128xf32>
      %134 = arith.mulf %131, %131 : vector<8x128xf32>
      %135 = arith.addf %117, %134 : vector<8x128xf32>
      %c0_i32_50 = arith.constant 0 : i32
      %136 = arith.addi %c0_i32_50, %55 : i32
      %137 = arith.index_cast %9 : i32 to index
      %138 = arith.index_cast %136 : i32 to index
      %c0_51 = arith.constant 0 : index
      %139 = vector.load %arg5[%137, %138, %c0_51] : memref<2x24x128xf32, #tpu.memory_space<vmem>>, vector<1x8x128xf32>
      %140 = vector.shape_cast %139 : vector<1x8x128xf32> to vector<8x128xf32>
      %c0_i32_52 = arith.constant 0 : i32
      %141 = arith.addi %c0_i32_52, %55 : i32
      %142 = arith.index_cast %9 : i32 to index
      %143 = arith.index_cast %141 : i32 to index
      %c0_53 = arith.constant 0 : index
      %144 = vector.load %arg6[%142, %143, %c0_53] : memref<2x24x128xf32, #tpu.memory_space<vmem>>, vector<1x8x128xf32>
      %145 = vector.shape_cast %144 : vector<1x8x128xf32> to vector<8x128xf32>
      %c4_i32_54 = arith.constant 4 : i32
      %146 = tpu.dynamic_rotate %140 by %c4_i32_54 dim 1 : vector<8x128xf32>, i32 -> vector<8x128xf32>
      %c4_i32_55 = arith.constant 4 : i32
      %147 = tpu.dynamic_rotate %145 by %c4_i32_55 dim 1 : vector<8x128xf32>, i32 -> vector<8x128xf32>
      %148 = arith.subf %60, %146 : vector<8x128xf32>
      %149 = arith.subf %65, %147 : vector<8x128xf32>
      %150 = arith.mulf %148, %148 : vector<8x128xf32>
      %151 = arith.addf %133, %150 : vector<8x128xf32>
      %152 = arith.mulf %149, %149 : vector<8x128xf32>
      %153 = arith.addf %135, %152 : vector<8x128xf32>
      %c0_i32_56 = arith.constant 0 : i32
      %154 = arith.addi %c0_i32_56, %55 : i32
      %155 = arith.index_cast %9 : i32 to index
      %156 = arith.index_cast %154 : i32 to index
      %c0_57 = arith.constant 0 : index
      %157 = vector.load %arg5[%155, %156, %c0_57] : memref<2x24x128xf32, #tpu.memory_space<vmem>>, vector<1x8x128xf32>
      %158 = vector.shape_cast %157 : vector<1x8x128xf32> to vector<8x128xf32>
      %c0_i32_58 = arith.constant 0 : i32
      %159 = arith.addi %c0_i32_58, %55 : i32
      %160 = arith.index_cast %9 : i32 to index
      %161 = arith.index_cast %159 : i32 to index
      %c0_59 = arith.constant 0 : index
      %162 = vector.load %arg6[%160, %161, %c0_59] : memref<2x24x128xf32, #tpu.memory_space<vmem>>, vector<1x8x128xf32>
      %163 = vector.shape_cast %162 : vector<1x8x128xf32> to vector<8x128xf32>
      %c124_i32_60 = arith.constant 124 : i32
      %164 = tpu.dynamic_rotate %158 by %c124_i32_60 dim 1 : vector<8x128xf32>, i32 -> vector<8x128xf32>
      %c124_i32_61 = arith.constant 124 : i32
      %165 = tpu.dynamic_rotate %163 by %c124_i32_61 dim 1 : vector<8x128xf32>, i32 -> vector<8x128xf32>
      %166 = arith.subf %60, %164 : vector<8x128xf32>
      %167 = arith.subf %65, %165 : vector<8x128xf32>
      %168 = arith.mulf %166, %166 : vector<8x128xf32>
      %169 = arith.addf %151, %168 : vector<8x128xf32>
      %170 = arith.mulf %167, %167 : vector<8x128xf32>
      %171 = arith.addf %153, %170 : vector<8x128xf32>
      %c8_i32_62 = arith.constant 8 : i32
      %172 = arith.addi %c8_i32_62, %55 : i32
      %173 = arith.index_cast %9 : i32 to index
      %174 = arith.index_cast %172 : i32 to index
      %c0_63 = arith.constant 0 : index
      %175 = vector.load %arg5[%173, %174, %c0_63] : memref<2x24x128xf32, #tpu.memory_space<vmem>>, vector<1x8x128xf32>
      %176 = vector.shape_cast %175 : vector<1x8x128xf32> to vector<8x128xf32>
      %c8_i32_64 = arith.constant 8 : i32
      %177 = arith.addi %c8_i32_64, %55 : i32
      %178 = arith.index_cast %9 : i32 to index
      %179 = arith.index_cast %177 : i32 to index
      %c0_65 = arith.constant 0 : index
      %180 = vector.load %arg6[%178, %179, %c0_65] : memref<2x24x128xf32, #tpu.memory_space<vmem>>, vector<1x8x128xf32>
      %181 = vector.shape_cast %180 : vector<1x8x128xf32> to vector<8x128xf32>
      %c4_i32_66 = arith.constant 4 : i32
      %182 = tpu.dynamic_rotate %176 by %c4_i32_66 dim 1 : vector<8x128xf32>, i32 -> vector<8x128xf32>
      %c4_i32_67 = arith.constant 4 : i32
      %183 = tpu.dynamic_rotate %181 by %c4_i32_67 dim 1 : vector<8x128xf32>, i32 -> vector<8x128xf32>
      %184 = arith.subf %60, %182 : vector<8x128xf32>
      %185 = arith.subf %65, %183 : vector<8x128xf32>
      %186 = arith.mulf %184, %184 : vector<8x128xf32>
      %187 = arith.addf %169, %186 : vector<8x128xf32>
      %188 = arith.mulf %185, %185 : vector<8x128xf32>
      %189 = arith.addf %171, %188 : vector<8x128xf32>
      %c8_i32_68 = arith.constant 8 : i32
      %190 = arith.addi %c8_i32_68, %55 : i32
      %191 = arith.index_cast %9 : i32 to index
      %192 = arith.index_cast %190 : i32 to index
      %c0_69 = arith.constant 0 : index
      %193 = vector.load %arg5[%191, %192, %c0_69] : memref<2x24x128xf32, #tpu.memory_space<vmem>>, vector<1x8x128xf32>
      %194 = vector.shape_cast %193 : vector<1x8x128xf32> to vector<8x128xf32>
      %c8_i32_70 = arith.constant 8 : i32
      %195 = arith.addi %c8_i32_70, %55 : i32
      %196 = arith.index_cast %9 : i32 to index
      %197 = arith.index_cast %195 : i32 to index
      %c0_71 = arith.constant 0 : index
      %198 = vector.load %arg6[%196, %197, %c0_71] : memref<2x24x128xf32, #tpu.memory_space<vmem>>, vector<1x8x128xf32>
      %199 = vector.shape_cast %198 : vector<1x8x128xf32> to vector<8x128xf32>
      %c124_i32_72 = arith.constant 124 : i32
      %200 = tpu.dynamic_rotate %194 by %c124_i32_72 dim 1 : vector<8x128xf32>, i32 -> vector<8x128xf32>
      %c124_i32_73 = arith.constant 124 : i32
      %201 = tpu.dynamic_rotate %199 by %c124_i32_73 dim 1 : vector<8x128xf32>, i32 -> vector<8x128xf32>
      %202 = arith.subf %60, %200 : vector<8x128xf32>
      %203 = arith.subf %65, %201 : vector<8x128xf32>
      %204 = arith.mulf %202, %202 : vector<8x128xf32>
      %205 = arith.addf %187, %204 : vector<8x128xf32>
      %206 = arith.mulf %203, %203 : vector<8x128xf32>
      %207 = arith.addf %189, %206 : vector<8x128xf32>
      %cst_74 = arith.constant 1.17549435E-38 : f32
      %208 = vector.broadcast %cst_74 : f32 to vector<8x128xf32>
      %209 = arith.maximumf %205, %208 : vector<8x128xf32>
      %210 = math.rsqrt %209 : vector<8x128xf32>
      %cst_75 = arith.constant 1.17549435E-38 : f32
      %211 = vector.broadcast %cst_75 : f32 to vector<8x128xf32>
      %212 = arith.maximumf %207, %211 : vector<8x128xf32>
      %213 = math.rsqrt %212 : vector<8x128xf32>
      %cst_76 = arith.constant 0.000000e+00 : f32
      %214 = vector.broadcast %cst_76 : f32 to vector<8x128xf32>
      %215 = arith.mulf %78, %210 : vector<8x128xf32>
      %216 = arith.mulf %79, %213 : vector<8x128xf32>
      %217 = arith.subf %215, %216 : vector<8x128xf32>
      %218 = math.absf %217 : vector<8x128xf32>
      %219 = arith.addf %214, %218 : vector<8x128xf32>
      %220 = arith.mulf %94, %210 : vector<8x128xf32>
      %221 = arith.mulf %95, %213 : vector<8x128xf32>
      %222 = arith.subf %220, %221 : vector<8x128xf32>
      %223 = math.absf %222 : vector<8x128xf32>
      %224 = arith.addf %219, %223 : vector<8x128xf32>
      %225 = arith.mulf %112, %210 : vector<8x128xf32>
      %226 = arith.mulf %113, %213 : vector<8x128xf32>
      %227 = arith.subf %225, %226 : vector<8x128xf32>
      %228 = math.absf %227 : vector<8x128xf32>
      %229 = arith.addf %224, %228 : vector<8x128xf32>
      %230 = arith.mulf %130, %210 : vector<8x128xf32>
      %231 = arith.mulf %131, %213 : vector<8x128xf32>
      %232 = arith.subf %230, %231 : vector<8x128xf32>
      %233 = math.absf %232 : vector<8x128xf32>
      %234 = arith.addf %229, %233 : vector<8x128xf32>
      %235 = arith.mulf %148, %210 : vector<8x128xf32>
      %236 = arith.mulf %149, %213 : vector<8x128xf32>
      %237 = arith.subf %235, %236 : vector<8x128xf32>
      %238 = math.absf %237 : vector<8x128xf32>
      %239 = arith.addf %234, %238 : vector<8x128xf32>
      %240 = arith.mulf %166, %210 : vector<8x128xf32>
      %241 = arith.mulf %167, %213 : vector<8x128xf32>
      %242 = arith.subf %240, %241 : vector<8x128xf32>
      %243 = math.absf %242 : vector<8x128xf32>
      %244 = arith.addf %239, %243 : vector<8x128xf32>
      %245 = arith.mulf %184, %210 : vector<8x128xf32>
      %246 = arith.mulf %185, %213 : vector<8x128xf32>
      %247 = arith.subf %245, %246 : vector<8x128xf32>
      %248 = math.absf %247 : vector<8x128xf32>
      %249 = arith.addf %244, %248 : vector<8x128xf32>
      %250 = arith.mulf %202, %210 : vector<8x128xf32>
      %251 = arith.mulf %203, %213 : vector<8x128xf32>
      %252 = arith.subf %250, %251 : vector<8x128xf32>
      %253 = math.absf %252 : vector<8x128xf32>
      %254 = arith.addf %249, %253 : vector<8x128xf32>
      %255 = vector.broadcast %55 : i32 to vector<8x1xi32>
      %256 = arith.addi %33, %255 : vector<8x1xi32>
      %257 = vector.broadcast %32 : i32 to vector<8x1xi32>
      %258 = arith.cmpi sge, %256, %257 : vector<8x1xi32>
      %cst_77 = arith.constant 0.000000e+00 : f32
      %259 = vector.shape_cast %258 : vector<8x1xi1> to vector<8x1xi1>
      %260 = vector.broadcast %259 : vector<8x1xi1> to vector<8x128xi1>
      %261 = vector.broadcast %cst_77 : f32 to vector<8x128xf32>
      %262 = arith.select %260, %254, %261 : vector<8x128xi1>, vector<8x128xf32>
      %263 = arith.addf %arg10, %262 : vector<8x128xf32>
      scf.yield %263 : vector<8x128xf32>
    }
    %c2_i32_20 = arith.constant 2 : i32
    %cst_21 = arith.constant 0.000000e+00 : f32
    %43 = vector.broadcast %cst_21 : f32 to vector<8x128xf32>
    %44 = arith.select %39, %42, %43 : vector<8x128xi1>, vector<8x128xf32>
    %45 = vector.shape_cast %44 : vector<8x128xf32> to vector<1x8x128xf32>
    %cst_22 = arith.constant dense<0.000000e+00> : vector<1xf32>
    %46 = vector.multi_reduction <add>, %45, %cst_22 [1, 2] : vector<1x8x128xf32> to vector<1xf32>
    %47 = vector.shape_cast %46 : vector<1xf32> to vector<1x1x1xf32>
    %48 = vector.extract %47[0, 0, 0] : f32 from vector<1x1x1xf32>
    %c0 = arith.constant 0 : index
    %49 = memref.load %arg8[%c0] : memref<1xf32, #tpu.memory_space<smem>>
    %50 = arith.addf %49, %48 : f32
    %c0_23 = arith.constant 0 : index
    %51 = memref.load %arg8[%c0_23] : memref<1xf32, #tpu.memory_space<smem>>
    memref.store %50, %arg8[%c0_23] : memref<1xf32, #tpu.memory_space<smem>>
    %c3_i32 = arith.constant 3 : i32
    %52 = arith.cmpi eq, %arg1, %c3_i32 : i32
    %53 = arith.extui %52 : i1 to i32
    %c0_i32_24 = arith.constant 0 : i32
    %54 = arith.cmpi ne, %53, %c0_i32_24 : i32
    scf.if %54 {
      %c0_25 = arith.constant 0 : index
      %55 = memref.load %arg8[%c0_25] : memref<1xf32, #tpu.memory_space<smem>>
      %56 = vector.broadcast %55 : f32 to vector<1x8x128xf32>
      %c0_26 = arith.constant 0 : index
      %c0_27 = arith.constant 0 : index
      %c0_28 = arith.constant 0 : index
      %57 = vector.load %arg4[%c0_26, %c0_27, %c0_28] : memref<1x8x128xf32, #tpu.memory_space<vmem>>, vector<1x8x128xf32>
      tpu.vector_store %arg4[%c0_26, %c0_27, %c0_28], %56 {strides = array<i32>} : memref<1x8x128xf32, #tpu.memory_space<vmem>>, vector<1x8x128xf32>,
    } else {
    }
    return
  }
  func.func @transform_2(%arg0: i32, %arg1: i32) -> (i32, i32, i32) {
    %c0_i32 = arith.constant 0 : i32
    %c0_i32_0 = arith.constant 0 : i32
    %c0_i32_1 = arith.constant 0 : i32
    return %arg0, %c0_i32, %c0_i32_0 : i32, i32, i32
  }
}

</mosaic_0001>

<llo_original>
// kernel: tpu_custom_call.1
$region0: #{tpu_custom_call.1}
  #allocation0 [shape = 'u32[]', space=smem, size = 0x4, offset = 0x4, fixed_abs, tag = 'smem constant byte address 0x4 - core index']
  #allocation1 [shape = 'u32[144,128]{1,0:T(1,128)}', space=vmem, size = 0x12000, scoped, tag = 'internal scratch']
  #allocation2 [shape = 'f32[2,24,128]{2,1,0:T(8,128)}', space=vmem, size = 0x6000, scoped, tag = 'scratch operand']
  #allocation3 [shape = 'f32[2,24,128]{2,1,0:T(8,128)}', space=vmem, size = 0x6000, scoped, tag = 'scratch operand']
  #allocation4 [shape = 's32[4]{0}', space=sflag, size = 0x10, scoped, tag = 'scratch operand']
  #allocation5 [shape = 'f32[1]{0:T(128)}', space=smem, size = 0x200, scoped, tag = 'scratch operand']
  #allocation8 [shape = 's32[]', space=sflag, size = 0x4, offset = 0, fixed_abs, tag = 'sflag constant byte address 0x0 - dummy sync flag']
  #allocation9 [shape = 's32[]', space=sflag, size = 0x4, offset = 0, fixed_abs, tag = 'sflag constant byte address 0x0 - dummy sync flag']
  #allocation10 [shape = 'u32[]', space=smem, size = 0x4, offset = 0x44, fixed_abs, tag = 'smem constant byte address 0x44 - assertion arg 0']
  #allocation11 [shape = 'u32[]', space=smem, size = 0x4, offset = 0x48, fixed_abs, tag = 'smem constant byte address 0x48 - assertion arg 1']
  #allocation12 [shape = 's32[]', space=sflag, size = 0x4, offset = 0, fixed_abs, tag = 'sflag constant byte address 0x0 - dummy sync flag']
  #allocation13 [shape = 's32[]', space=sflag, size = 0x4, offset = 0, fixed_abs, tag = 'sflag constant byte address 0x0 - dummy sync flag']
  #allocation14 [shape = 's32[]', space=sflag, size = 0x4, offset = 0, fixed_abs, tag = 'sflag constant byte address 0x0 - dummy sync flag']
  #allocation15 [shape = 's32[]', space=sflag, size = 0x4, offset = 0, fixed_abs, tag = 'sflag constant byte address 0x0 - dummy sync flag']
  #allocation16 [shape = 's32[]', space=sflag, size = 0x4, offset = 0, fixed_abs, tag = 'sflag constant byte address 0x0 - dummy sync flag']
  #allocation17 [shape = 's32[]', space=sflag, size = 0x4, offset = 0, fixed_abs, tag = 'sflag constant byte address 0x0 - dummy sync flag']
  %s0 = inlined_call_operand.hbm [shape: f32[2,64,128], index: 0, kind: input, shape index: {}]
  %s1 = inlined_call_operand.hbm [shape: f32[2,64,128], index: 1, kind: input, shape index: {}]
  %s2 = inlined_call_operand.hbm [shape: f32[2,8,128], index: 2, kind: output, shape index: {}]
  %s3 = sld [smem:[#allocation0]]
  $region60: #{tpu_custom_call.1} parent=0
    _
  %s5 = ssub.s32 1, %s3
  %s6 = scalar_select 0, %s5, %s3
  $region1: #{tpu_custom_call.1} parent=0
    #allocation6 [shape = 'u8[8192]{0}', space=vmem, size = 0x2000, scoped, tag = 'output window, operand 0']
    #allocation7 [shape = 's32[2]{0}', space=sflag, size = 0x8, scoped, tag = 'scoped memory for tpu_custom_call.1']
    %7 = vsyncpa [#allocation7], 0
    %s8 = scalar_lea.sflag [#allocation7], 1
    %9 = vsyncpa %s8, 0
    loop: start=0, step=1, limit=9
    $region2: #{tpu_custom_call.1} parent=1 // loop_pre_header
      _
    $region3: #{tpu_custom_call.1} parent=1 // loop_header
      %s11 = sphi 0, %s15
      %p12 = scmp.ge.s32.totalorder %s11, 9
      %s17 = sphi 0, %s27
      %s18 = sphi 0, %s23
      %s19 = sphi 0, %s17
      %s20 = sphi 0, %s18
      %s30 = sphi 0, %s32
      %s33 = sphi 0, %s30
      %s43 = sphi 0, %s33
    $region4: #{tpu_custom_call.1} parent=1 // loop_header_branch
      %14 = sbr.rel (%p12) target = $region8
    $region5: #{tpu_custom_call.1} parent=1 // loop_body
      %s16 = ssub.s32 %s11, 1
      %s21 = sadd.s32 1, %s18
      %p22 = scmp.ge.s32.totalorder %s21, 4
      %s23 = scalar_select %p22, 0, %s21
      %s24 = sadd.s32 1, %s17
      %s25 = scalar_select %p22, %s24, %s17
      %p26 = scmp.ge.s32.totalorder %s25, 2
      %s27 = scalar_select %p26, 0, %s25
      %s28 = ssub.s32 %s17, %s27
      %p29 = scmp.eq.s32.totalorder %s28, 0
      %s31 = sadd.s32 %s30, 1
      %s32 = scalar_select %p29, %s30, %s31
      %p34 = pneg %p29
      %p35 = scmp.eq.s32.totalorder %s11, 7
      %p36 = por %p34, %p35
      %p37 = scmp.ne.s32.totalorder %s30, %s33
      %p38 = scmp.eq.s32.totalorder %s11, 0
      %p39 = por %p37, %p38
      %p40 = scmp.ne.s32.totalorder %s30, %s33
      %p41 = scmp.eq.s32.totalorder %s16, 7
      %p42 = por %p40, %p41
      %p44 = scmp.ne.s32.totalorder %s33, %s43
      %p45 = scmp.eq.s32.totalorder %s16, 0
      %p46 = por %p44, %p45
      %p47 = scmp.lt.s32.totalorder %s11, 8
      // Predicated region
      $region9: #{tpu_custom_call.1} parent=5 // pred_check
        %p48 = pneg %p47
      $region10: #{tpu_custom_call.1} parent=5 // pred_check_branch
        %50 = sbr.rel (%p48) target = $region12
      $region11: #{tpu_custom_call.1} parent=5 // pred_region
        %p51 = pneg %p39
        %p52 = pneg %p36
        %s53 = sand.u32 %s30, 1
        %s54 = scalar_lea.sflag [#allocation7], %s53
        %s55 = sand.u32 %s30, 1
        %s56 = smul.addr %s55, 8
        %s57 = scalar_lea.vmem [#allocation6], %s56
        %p58 = scmp.lt.s32.totalorder %s18, 0
        %s59 = ssub.s32 0, %s18
        %s60 = scalar_select %p58, %s59, %s18
        %s61 = sand.u32 %s60, 1
        %s62 = ssub.s32 0, %s61
        %s63 = scalar_select %p58, %s62, %s61
        %p64 = scmp.ne.s32.totalorder %s63, 0
        %p65 = scmp.lt.s32.totalorder %s63, 0
        %p66 = pnand %p65, %p64
        %p67 = pneg %p66
        %s68 = sadd.s32 %s63, 2
        %s69 = scalar_select %p67, %s68, %s63
        %s70 = smul.u32 %s18, 16
        %p71 = scmp.lt.s32.totalorder %s70, 40
        %s72 = scalar_select %p71, %s70, 40
        %p73 = scmp.eq.s32.totalorder %s18, 0
        // Predicated region
        $region13: #{tpu_custom_call.1} parent=11 // pred_check
          %p74 = pneg %p73
        $region14: #{tpu_custom_call.1} parent=11 // pred_check_branch
          %76 = sbr.rel (%p74) target = $region16
        $region15: #{tpu_custom_call.1} parent=11 // pred_region
          %s77 = scalar_lea.smem [#allocation5], 0
          %78 = sst [smem:[%s77]] 0.0
          %s79 = smul.u32 %s17, 64
          %s80 = sadd.s32 %s72, %s79
          %s81 = smul.addr %s80, 16
          %s82 = scalar_lea.hbm %s0, %s81
          %s83 = smul.u32 %s69, 24
          %s84 = scalar_lea.vmem [#allocation2], %s83
          %s85 = scalar_lea.sflag [#allocation4], %s69
          // Predicated region
          $region17: #{tpu_custom_call.1} parent=15 // pred_check
            _
          $region18: #{tpu_custom_call.1} parent=15 // pred_check_branch
            %87 = sbr.rel target = $region20
          $region19: #{tpu_custom_call.1} parent=15 // pred_region
            %88 = sst [smem:[#allocation10]] [#allocation9]
            %89 = sst [smem:[#allocation11]] [#allocation8]
          $region20: #{tpu_custom_call.1} parent=15 // pred_fallthru
            _
          %91 = shalt.err (0)
          %s93 = sshll.u32 %s84, 4
          %s94 = int_to_ptr.vmem [resolvable:$true] %s93
          %96 = dma.hbm_to_vmem [thread:$0]  %s82, 384, %s94, %s85
          %s97 = smul.addr %s80, 16
          %s98 = scalar_lea.hbm %s1, %s97
          %s99 = scalar_lea.vmem [#allocation3], %s83
          %s100 = sadd.s32 %s69, 2
          %s101 = scalar_lea.sflag [#allocation4], %s100
          // Predicated region
          $region21: #{tpu_custom_call.1} parent=15 // pred_check
            _
          $region22: #{tpu_custom_call.1} parent=15 // pred_check_branch
            %103 = sbr.rel target = $region24
          $region23: #{tpu_custom_call.1} parent=15 // pred_region
            %104 = sst [smem:[#allocation10]] [#allocation13]
            %105 = sst [smem:[#allocation11]] [#allocation12]
          $region24: #{tpu_custom_call.1} parent=15 // pred_fallthru
            _
          %107 = shalt.err (0)
          %s109 = sshll.u32 %s99, 4
          %s110 = int_to_ptr.vmem [resolvable:$true] %s109
          %112 = dma.hbm_to_vmem [thread:$0]  %s98, 384, %s110, %s101
        $region16: #{tpu_custom_call.1} parent=11 // pred_fallthru
          _
        %s113 = scalar_lea.sflag [#allocation4], %s69
        %s114 = smul.u32 24, 1
        %s115 = sshll.u32 %s114, 4
        %116 = dma.done %s113, %s115
        %s117 = sadd.s32 %s69, 2
        %s118 = scalar_lea.sflag [#allocation4], %s117
        %s119 = sshll.u32 %s114, 4
        %120 = dma.done %s118, %s119
        %s121 = sadd.s32 %s18, 1
        %p122 = scmp.lt.s32.totalorder %s121, 4
        // Predicated region
        $region25: #{tpu_custom_call.1} parent=11 // pred_check
          %p123 = pneg %p122
        $region26: #{tpu_custom_call.1} parent=11 // pred_check_branch
          %125 = sbr.rel (%p123) target = $region28
        $region27: #{tpu_custom_call.1} parent=11 // pred_region
          %s126 = smul.u32 %s121, 16
          %p127 = scmp.lt.s32.totalorder %s126, 40
          %s128 = scalar_select %p127, %s126, 40
          %s129 = ssub.s32 1, %s69
          %s130 = smul.u32 %s17, 64
          %s131 = sadd.s32 %s128, %s130
          %s132 = smul.addr %s131, 16
          %s133 = scalar_lea.hbm %s0, %s132
          %s134 = smul.u32 %s129, 24
          %s135 = scalar_lea.vmem [#allocation2], %s134
          %s136 = scalar_lea.sflag [#allocation4], %s129
          // Predicated region
          $region29: #{tpu_custom_call.1} parent=27 // pred_check
            _
          $region30: #{tpu_custom_call.1} parent=27 // pred_check_branch
            %138 = sbr.rel target = $region32
          $region31: #{tpu_custom_call.1} parent=27 // pred_region
            %139 = sst [smem:[#allocation10]] [#allocation15]
            %140 = sst [smem:[#allocation11]] [#allocation14]
          $region32: #{tpu_custom_call.1} parent=27 // pred_fallthru
            _
          %142 = shalt.err (0)
          %s144 = sshll.u32 %s135, 4
          %s145 = int_to_ptr.vmem [resolvable:$true] %s144
          %147 = dma.hbm_to_vmem [thread:$0]  %s133, 384, %s145, %s136
          %s148 = smul.addr %s131, 16
          %s149 = scalar_lea.hbm %s1, %s148
          %s150 = scalar_lea.vmem [#allocation3], %s134
          %s151 = sadd.s32 %s129, 2
          %s152 = scalar_lea.sflag [#allocation4], %s151
          // Predicated region
          $region33: #{tpu_custom_call.1} parent=27 // pred_check
            _
          $region34: #{tpu_custom_call.1} parent=27 // pred_check_branch
            %154 = sbr.rel target = $region36
          $region35: #{tpu_custom_call.1} parent=27 // pred_region
            %155 = sst [smem:[#allocation10]] [#allocation17]
            %156 = sst [smem:[#allocation11]] [#allocation16]
          $region36: #{tpu_custom_call.1} parent=27 // pred_fallthru
            _
          %158 = shalt.err (0)
          %s160 = sshll.u32 %s150, 4
          %s161 = int_to_ptr.vmem [resolvable:$true] %s160
          %163 = dma.hbm_to_vmem [thread:$0]  %s149, 384, %s161, %s152
        $region28: #{tpu_custom_call.1} parent=11 // pred_fallthru
          _
        %s164 = ssub.s32 %s70, %s72
        %v165 = vlaneseq
        %v166 = vshrl.u32 %v165, 7
        %v167 = vlaneseq
        %v168 = vand.u32 %v167, 127
        %vm169 = vcmp.ge.s32.totalorder %v168, 4
        %vm170 = vcmp.lt.s32.totalorder %v168, 124
        %vm171 = vmand %vm169, %vm170
        loop: start=0, step=1, limit=2
        $region37: #{tpu_custom_call.1} parent=11 // loop_pre_header
          _
        $region38: #{tpu_custom_call.1} parent=11 // loop_header
          %s173 = sphi 0, %s177
          %p174 = scmp.ge.s32.totalorder %s173, 2
          %v178 = vphi 0.0, %v327
        $region39: #{tpu_custom_call.1} parent=11 // loop_header_branch
          %176 = sbr.rel (%p174) target = $region43
        $region40: #{tpu_custom_call.1} parent=11 // loop_body
          %s179 = smul.u32 %s173, 8
          %s180 = sadd.s32 %s179, 4
          %s181 = smul.u32 %s69, 24
          %s182 = sadd.s32 %s180, %s181
          %s183 = scalar_lea.vmem [#allocation2], %s182
          %v184 = vld [vmem:[%s183] sm:$0xff]
          %s185 = scalar_lea.vmem [#allocation3], %s182
          %v186 = vld [vmem:[%s185] sm:$0xff]
          %s187 = sadd.s32 %s179, 3
          %s188 = sadd.s32 %s187, %s181
          %s189 = scalar_lea.vmem [#allocation2], %s188
          %v190 = vld [vmem:[%s189] sm:$0xff]
          %s191 = scalar_lea.vmem [#allocation3], %s188
          %v192 = vld [vmem:[%s191] sm:$0xff]
          %v193 = vsub.f32 %v184, %v190
          %v194 = vsub.f32 %v186, %v192
          %v195 = vmul.f32 %v193, %v193
          %v196 = vadd.f32 %v195, 0.0
          %v197 = vmul.f32 %v194, %v194
          %v198 = vadd.f32 %v197, 0.0
          %s199 = sadd.s32 %s179, 8
          %s200 = sadd.s32 %s199, %s181
          %s201 = scalar_lea.vmem [#allocation2], %s200
          %v202 = vld [vmem:[%s201] sm:$0xff]
          %s203 = scalar_lea.vmem [#allocation3], %s200
          %v204 = vld [vmem:[%s203] sm:$0xff]
          %v205 = vsub.f32 %v184, %v202
          %v206 = vsub.f32 %v186, %v204
          %v207 = vmul.f32 %v205, %v205
          %v208 = vadd.f32 %v196, %v207
          %v209 = vmul.f32 %v206, %v206
          %v210 = vadd.f32 %v198, %v209
          %211 = vrot.lane.b32.xlu0 %v184, 2
          %v212 = vpop.permute.xlu0 %211
          %213 = vrot.lane.b32.xlu0 %v186, 2
          %v214 = vpop.permute.xlu0 %213
          %v215 = vsub.f32 %v184, %v212
          %v216 = vsub.f32 %v186, %v214
          %v217 = vmul.f32 %v215, %v215
          %v218 = vadd.f32 %v208, %v217
          %v219 = vmul.f32 %v216, %v216
          %v220 = vadd.f32 %v210, %v219
          %221 = vrot.lane.b32.xlu0 %v184, 127
          %v222 = vpop.permute.xlu0 %221
          %223 = vrot.lane.b32.xlu0 %v186, 127
          %v224 = vpop.permute.xlu0 %223
          %v225 = vsub.f32 %v184, %v222
          %v226 = vsub.f32 %v186, %v224
          %v227 = vmul.f32 %v225, %v225
          %v228 = vadd.f32 %v218, %v227
          %v229 = vmul.f32 %v226, %v226
          %v230 = vadd.f32 %v220, %v229
          %s231 = sadd.s32 %s179, %s181
          %s232 = scalar_lea.vmem [#allocation2], %s231
          %v233 = vld [vmem:[%s232] sm:$0xff]
          %s234 = scalar_lea.vmem [#allocation3], %s231
          %v235 = vld [vmem:[%s234] sm:$0xff]
          %236 = vrot.lane.b32.xlu0 %v233, 4
          %v237 = vpop.permute.xlu0 %236
          %238 = vrot.lane.b32.xlu0 %v235, 4
          %v239 = vpop.permute.xlu0 %238
          %v240 = vsub.f32 %v184, %v237
          %v241 = vsub.f32 %v186, %v239
          %v242 = vmul.f32 %v240, %v240
          %v243 = vadd.f32 %v228, %v242
          %v244 = vmul.f32 %v241, %v241
          %v245 = vadd.f32 %v230, %v244
          %246 = vrot.lane.b32.xlu0 %v233, 124
          %v247 = vpop.permute.xlu0 %246
          %248 = vrot.lane.b32.xlu0 %v235, 124
          %v249 = vpop.permute.xlu0 %248
          %v250 = vsub.f32 %v184, %v247
          %v251 = vsub.f32 %v186, %v249
          %v252 = vmul.f32 %v250, %v250
          %v253 = vadd.f32 %v243, %v252
          %v254 = vmul.f32 %v251, %v251
          %v255 = vadd.f32 %v245, %v254
          %256 = vrot.lane.b32.xlu0 %v202, 4
          %v257 = vpop.permute.xlu0 %256
          %258 = vrot.lane.b32.xlu0 %v204, 4
          %v259 = vpop.permute.xlu0 %258
          %v260 = vsub.f32 %v184, %v257
          %v261 = vsub.f32 %v186, %v259
          %v262 = vmul.f32 %v260, %v260
          %v263 = vadd.f32 %v253, %v262
          %v264 = vmul.f32 %v261, %v261
          %v265 = vadd.f32 %v255, %v264
          %266 = vrot.lane.b32.xlu0 %v202, 124
          %v267 = vpop.permute.xlu0 %266
          %268 = vrot.lane.b32.xlu0 %v204, 124
          %v269 = vpop.permute.xlu0 %268
          %v270 = vsub.f32 %v184, %v267
          %v271 = vsub.f32 %v186, %v269
          %v272 = vmul.f32 %v270, %v270
          %v273 = vadd.f32 %v263, %v272
          %v274 = vmul.f32 %v271, %v271
          %v275 = vadd.f32 %v265, %v274
          %v276 = vmax.f32 %v273, 1.1754944e-38
          %v277 = vrsqrt.pop %v276
          %v278 = vmax.f32 %v275, 1.1754944e-38
          %v279 = vrsqrt.pop %v278
          %v280 = vmul.f32 %v193, %v277
          %v281 = vmul.f32 %v194, %v279
          %v282 = vsub.f32 %v280, %v281
          %v283 = vand.u32 2147483647, %v282
          %v284 = vadd.f32 %v283, 0.0
          %v285 = vmul.f32 %v205, %v277
          %v286 = vmul.f32 %v206, %v279
          %v287 = vsub.f32 %v285, %v286
          %v288 = vand.u32 2147483647, %v287
          %v289 = vadd.f32 %v284, %v288
          %v290 = vmul.f32 %v215, %v277
          %v291 = vmul.f32 %v216, %v279
          %v292 = vsub.f32 %v290, %v291
          %v293 = vand.u32 2147483647, %v292
          %v294 = vadd.f32 %v289, %v293
          %v295 = vmul.f32 %v225, %v277
          %v296 = vmul.f32 %v226, %v279
          %v297 = vsub.f32 %v295, %v296
          %v298 = vand.u32 2147483647, %v297
          %v299 = vadd.f32 %v294, %v298
          %v300 = vmul.f32 %v240, %v277
          %v301 = vmul.f32 %v241, %v279
          %v302 = vsub.f32 %v300, %v301
          %v303 = vand.u32 2147483647, %v302
          %v304 = vadd.f32 %v299, %v303
          %v305 = vmul.f32 %v250, %v277
          %v306 = vmul.f32 %v251, %v279
          %v307 = vsub.f32 %v305, %v306
          %v308 = vand.u32 2147483647, %v307
          %v309 = vadd.f32 %v304, %v308
          %v310 = vmul.f32 %v260, %v277
          %v311 = vmul.f32 %v261, %v279
          %v312 = vsub.f32 %v310, %v311
          %v313 = vand.u32 2147483647, %v312
          %v314 = vadd.f32 %v309, %v313
          %v315 = vmul.f32 %v270, %v277
          %v316 = vmul.f32 %v271, %v279
          %v317 = vsub.f32 %v315, %v316
          %v318 = vand.u32 2147483647, %v317
          %v319 = vadd.f32 %v314, %v318
          %v320 = vstv %s179
          %v321 = vadd.s32 %v166, %v320
          %v322 = vstv %s164
          %vm323 = vcmp.ge.s32.totalorder %v321, %v322
          %v324 = vsel %vm323, 1, 0
          %vm325 = vcmp.eq.s32.totalorder %v324, 1
          %v326 = vsel %vm325, %v319, 0.0
          %v327 = vadd.f32 %v178, %v326
        $region41: #{tpu_custom_call.1} parent=11 // loop_footer
          %s177 = sadd.s32 1, %s173
        $region42: #{tpu_custom_call.1} parent=11 // loop_footer_branch
          %172 = sbr.rel target = $region38
        $region43: #{tpu_custom_call.1} parent=11 // loop_exit
          _
        %v328 = vsel %vm171, %v178, 0.0
        %329 = vadd.xlane.f32.xlu0 %v328
        %v330 = vpop.xlane.xlu0 %329
        %v331 = vrot.slane %v330, 4
        %v332 = vadd.f32 %v330, %v331
        %v333 = vrot.slane %v332, 2
        %v334 = vadd.f32 %v332, %v333
        %v335 = vrot.slane %v334, 1
        %v336 = vadd.f32 %v334, %v335
        %s337 = vtos %v336
        %s338 = sld [smem:[#allocation5]]
        %s339 = sadd.f32 %s338, %s337
        %s340 = scalar_lea.smem [#allocation5], 0
        %341 = sst [smem:[%s340]] %s339
        %p342 = scmp.eq.s32.totalorder %s18, 3
        // Predicated region
        $region44: #{tpu_custom_call.1} parent=11 // pred_check
          %p343 = pneg %p342
        $region45: #{tpu_custom_call.1} parent=11 // pred_check_branch
          %345 = sbr.rel (%p343) target = $region47
        $region46: #{tpu_custom_call.1} parent=11 // pred_region
          %s346 = sld [smem:[#allocation5]]
          %v347 = vstv %s346
          %348 = vst [vmem:[%s57] sm:$0xff] %v347
        $region47: #{tpu_custom_call.1} parent=11 // pred_fallthru
          _
        %s349 = sand.u32 %s30, 1
        %s350 = scalar_lea.sflag [#allocation7], %s349
        %s351 = sand.u32 %s30, 1
        %s352 = smul.addr %s351, 8
        %s353 = scalar_lea.vmem [#allocation6], %s352
        // Predicated region
        $region48: #{tpu_custom_call.1} parent=11 // pred_check
          %p354 = pneg %p36
        $region49: #{tpu_custom_call.1} parent=11 // pred_check_branch
          %356 = sbr.rel (%p354) target = $region51
        $region50: #{tpu_custom_call.1} parent=11 // pred_region
          %s358 = ssub.s32 128, 128
          %359 = vsyncadd %s350, %s358
          %s360 = smul.addr %s17, 128
          %s361 = scalar_lea.hbm %s2, %s360
          %s363 = sshll.u32 %s353, 4
          %s364 = int_to_ptr.vmem [resolvable:$true] %s363
          %366 = dma.vmem_to_hbm [thread:$0]  %s364, 128, %s361, %s350
        $region51: #{tpu_custom_call.1} parent=11 // pred_fallthru
          _
      $region12: #{tpu_custom_call.1} parent=5 // pred_fallthru
        _
      %p367 = scmp.le.s32.totalorder 1, %s11
      // Predicated region
      $region52: #{tpu_custom_call.1} parent=5 // pred_check
        %p368 = pneg %p367
      $region53: #{tpu_custom_call.1} parent=5 // pred_check_branch
        %370 = sbr.rel (%p368) target = $region55
      $region54: #{tpu_custom_call.1} parent=5 // pred_region
        %s371 = ssub.s32 %s11, 1
        // Predicated region
        $region56: #{tpu_custom_call.1} parent=54 // pred_check
          %p372 = pneg %p42
        $region57: #{tpu_custom_call.1} parent=54 // pred_check_branch
          %374 = sbr.rel (%p372) target = $region59
        $region58: #{tpu_custom_call.1} parent=54 // pred_region
          %s375 = sand.u32 %s33, 1
          %s376 = scalar_lea.sflag [#allocation7], %s375
          %s377 = sand.u32 %s33, 1
          %s378 = smul.addr %s377, 8
          %s379 = scalar_lea.vmem [#allocation6], %s378
          %380 = dma.done %s376, 128
        $region59: #{tpu_custom_call.1} parent=54 // pred_fallthru
          _
      $region55: #{tpu_custom_call.1} parent=5 // pred_fallthru
        _
    $region6: #{tpu_custom_call.1} parent=1 // loop_footer
      %s15 = sadd.s32 1, %s11
    $region7: #{tpu_custom_call.1} parent=1 // loop_footer_branch
      %10 = sbr.rel target = $region3
    $region8: #{tpu_custom_call.1} parent=1 // loop_exit
      _
    %381 = vsyncpa [#allocation7], 1
    %s382 = scalar_lea.sflag [#allocation7], 1
    %383 = vsyncpa %s382, 1
  %384 = vsyncmov [#allocation4]
  %s385 = vpop.sfrf %384
  %p386 = scmp.eq.s32.totalorder %s385, 0
  %p387 = pneg %p386
  %389 = shalt.err (%p387)
  %s390 = scalar_lea.sflag [#allocation4], 1
  %391 = vsyncmov %s390
  %s392 = vpop.sfrf %391
  %p393 = scmp.eq.s32.totalorder %s392, 0
  %p394 = pneg %p393
  %396 = shalt.err (%p394)
  %s397 = scalar_lea.sflag [#allocation4], 2
  %398 = vsyncmov %s397
  %s399 = vpop.sfrf %398
  %p400 = scmp.eq.s32.totalorder %s399, 0
  %p401 = pneg %p400
  %403 = shalt.err (%p401)
  %s404 = scalar_lea.sflag [#allocation4], 3
  %405 = vsyncmov %s404
  %s406 = vpop.sfrf %405
  %p407 = scmp.eq.s32.totalorder %s406, 0
  %p408 = pneg %p407
  %410 = shalt.err (%p408)

</llo_original>
